<compile_context>
chip_gen: v6e
topology: v6e:2x2x1
jax: 0.10.0
libtpu: 0.0.40
codegen_flags: <defaults>
</compile_context>

<pallas_src>
import jax
import jax.numpy as jnp
from jax.experimental import pallas as pl
from jax.experimental.pallas import tpu as pltpu


def join(inputs):
    """Faithful `Join.forward`: Sequence[Array] -> list[Array].  Zero-copy."""
    return list(inputs)


def _make_dma_copy_kernel(n):
    """Kernel issuing n HBM->HBM DMA copies (start all, then wait all)."""

    def kernel(*refs):
        in_refs = refs[:n]
        out_refs = refs[n:2 * n]
        sem = refs[2 * n]
        copies = [
            pltpu.make_async_copy(in_refs[i], out_refs[i], sem.at[i])
            for i in range(n)
        ]
        for c in copies:          # fire all DMAs so the engines overlap
            c.start()
        for c in copies:          # then drain
            c.wait()

    return kernel


def join_materialized(inputs):
    """Materialized pass-through: one pallas_call, pure HBM->HBM DMA per tensor."""
    inputs = [jnp.asarray(x) for x in inputs]
    n = len(inputs)
    if n == 0:
        return []

    outs = pl.pallas_call(
        _make_dma_copy_kernel(n),
        out_shape=[jax.ShapeDtypeStruct(x.shape, x.dtype) for x in inputs],
        in_specs=[pl.BlockSpec(memory_space=pl.ANY) for _ in inputs],
        out_specs=[pl.BlockSpec(memory_space=pl.ANY) for _ in inputs],
        scratch_shapes=[pltpu.SemaphoreType.DMA((n,))],
    )(*inputs)

    return list(outs)


if __name__ == "__main__":
    key = jax.random.PRNGKey(0)
    k1, k2, k3, k4 = jax.random.split(key, 4)

    # Small deterministic NCHW-style feature maps, including a ragged-shaped
    # tensor (no padding path needed anymore) and a bf16 tensor.
    x1 = jax.random.normal(k1, (2, 4, 16, 16), dtype=jnp.float32)
    x2 = jax.random.normal(k2, (2, 8, 8, 8), dtype=jnp.float32)
    x3 = jax.random.normal(k3, (2, 4, 16, 16), dtype=jnp.bfloat16)
    x4 = jax.random.normal(k4, (3, 5, 7), dtype=jnp.float32)  # odd-sized
    inputs = (x1, x2, x3, x4)

    # 1) Faithful Join semantics: zero-copy list of the same arrays.
    joined = join(inputs)
    assert isinstance(joined, list)
    assert len(joined) == len(inputs)
    assert all(a is b for a, b in zip(joined, inputs))

    # 2) Materialized pass-through via the fused HBM->HBM DMA copy kernel.
    outputs = join_materialized(inputs)
    jax.block_until_ready(outputs)

    assert isinstance(outputs, list)
    assert len(outputs) == len(inputs)
    for inp, out in zip(inputs, outputs):
        assert out.shape == inp.shape
        assert out.dtype == inp.dtype
        assert bool(jnp.array_equal(out, inp))

    print("KERNEL_OK")
</pallas_src>

<mosaic_0001>
module attributes {stable_mosaic.version = 11 : i64} {
  func.func @kernel(%arg0: memref<2x4x16x16xf32, #tpu.memory_space<any>>, %arg1: memref<2x8x8x8xf32, #tpu.memory_space<any>>, %arg2: memref<2x4x16x16xbf16, #tpu.memory_space<any>>, %arg3: memref<3x5x7xf32, #tpu.memory_space<any>>, %arg4: memref<2x4x16x16xf32, #tpu.memory_space<any>>, %arg5: memref<2x8x8x8xf32, #tpu.memory_space<any>>, %arg6: memref<2x4x16x16xbf16, #tpu.memory_space<any>>, %arg7: memref<3x5x7xf32, #tpu.memory_space<any>>, %arg8: memref<4x!tpu.dma_semaphore, #tpu.memory_space<semaphore_mem>>) attributes {dimension_semantics = [], scalar_prefetch = 0 : i64, scratch_operands = 1 : i64, tpu.core_type = #tpu.core_type<tc>} {
    %c0_i32 = arith.constant 0 : i32
    %0 = tpu.memref_slice %arg8[%c0_i32] : memref<4x!tpu.dma_semaphore, #tpu.memory_space<semaphore_mem>> -> memref<1x!tpu.dma_semaphore, #tpu.memory_space<semaphore_mem>>
    %1 = tpu.memref_squeeze %0 : memref<1x!tpu.dma_semaphore, #tpu.memory_space<semaphore_mem>> -> memref<!tpu.dma_semaphore, #tpu.memory_space<semaphore_mem>>
    tpu.enqueue_dma source(%arg0 : memref<2x4x16x16xf32, #tpu.memory_space<any>>) target(%arg4 : memref<2x4x16x16xf32, #tpu.memory_space<any>>) target_semaphore(%1 : memref<!tpu.dma_semaphore, #tpu.memory_space<semaphore_mem>>)
    %c1_i32 = arith.constant 1 : i32
    %2 = tpu.memref_slice %arg8[%c1_i32] : memref<4x!tpu.dma_semaphore, #tpu.memory_space<semaphore_mem>> -> memref<1x!tpu.dma_semaphore, #tpu.memory_space<semaphore_mem>>
    %3 = tpu.memref_squeeze %2 : memref<1x!tpu.dma_semaphore, #tpu.memory_space<semaphore_mem>> -> memref<!tpu.dma_semaphore, #tpu.memory_space<semaphore_mem>>
    tpu.enqueue_dma source(%arg1 : memref<2x8x8x8xf32, #tpu.memory_space<any>>) target(%arg5 : memref<2x8x8x8xf32, #tpu.memory_space<any>>) target_semaphore(%3 : memref<!tpu.dma_semaphore, #tpu.memory_space<semaphore_mem>>)
    %c2_i32 = arith.constant 2 : i32
    %4 = tpu.memref_slice %arg8[%c2_i32] : memref<4x!tpu.dma_semaphore, #tpu.memory_space<semaphore_mem>> -> memref<1x!tpu.dma_semaphore, #tpu.memory_space<semaphore_mem>>
    %5 = tpu.memref_squeeze %4 : memref<1x!tpu.dma_semaphore, #tpu.memory_space<semaphore_mem>> -> memref<!tpu.dma_semaphore, #tpu.memory_space<semaphore_mem>>
    tpu.enqueue_dma source(%arg2 : memref<2x4x16x16xbf16, #tpu.memory_space<any>>) target(%arg6 : memref<2x4x16x16xbf16, #tpu.memory_space<any>>) target_semaphore(%5 : memref<!tpu.dma_semaphore, #tpu.memory_space<semaphore_mem>>)
    %c3_i32 = arith.constant 3 : i32
    %6 = tpu.memref_slice %arg8[%c3_i32] : memref<4x!tpu.dma_semaphore, #tpu.memory_space<semaphore_mem>> -> memref<1x!tpu.dma_semaphore, #tpu.memory_space<semaphore_mem>>
    %7 = tpu.memref_squeeze %6 : memref<1x!tpu.dma_semaphore, #tpu.memory_space<semaphore_mem>> -> memref<!tpu.dma_semaphore, #tpu.memory_space<semaphore_mem>>
    tpu.enqueue_dma source(%arg3 : memref<3x5x7xf32, #tpu.memory_space<any>>) target(%arg7 : memref<3x5x7xf32, #tpu.memory_space<any>>) target_semaphore(%7 : memref<!tpu.dma_semaphore, #tpu.memory_space<semaphore_mem>>)
    %c0_i32_0 = arith.constant 0 : i32
    %8 = tpu.memref_slice %arg8[%c0_i32_0] : memref<4x!tpu.dma_semaphore, #tpu.memory_space<semaphore_mem>> -> memref<1x!tpu.dma_semaphore, #tpu.memory_space<semaphore_mem>>
    %9 = tpu.memref_squeeze %8 : memref<1x!tpu.dma_semaphore, #tpu.memory_space<semaphore_mem>> -> memref<!tpu.dma_semaphore, #tpu.memory_space<semaphore_mem>>
    tpu.wait_dma2 semaphore(%9 : memref<!tpu.dma_semaphore, #tpu.memory_space<semaphore_mem>>) src(%arg0 : memref<2x4x16x16xf32, #tpu.memory_space<any>>) dst(%arg4 : memref<2x4x16x16xf32, #tpu.memory_space<any>>)
    %c1_i32_1 = arith.constant 1 : i32
    %10 = tpu.memref_slice %arg8[%c1_i32_1] : memref<4x!tpu.dma_semaphore, #tpu.memory_space<semaphore_mem>> -> memref<1x!tpu.dma_semaphore, #tpu.memory_space<semaphore_mem>>
    %11 = tpu.memref_squeeze %10 : memref<1x!tpu.dma_semaphore, #tpu.memory_space<semaphore_mem>> -> memref<!tpu.dma_semaphore, #tpu.memory_space<semaphore_mem>>
    tpu.wait_dma2 semaphore(%11 : memref<!tpu.dma_semaphore, #tpu.memory_space<semaphore_mem>>) src(%arg1 : memref<2x8x8x8xf32, #tpu.memory_space<any>>) dst(%arg5 : memref<2x8x8x8xf32, #tpu.memory_space<any>>)
    %c2_i32_2 = arith.constant 2 : i32
    %12 = tpu.memref_slice %arg8[%c2_i32_2] : memref<4x!tpu.dma_semaphore, #tpu.memory_space<semaphore_mem>> -> memref<1x!tpu.dma_semaphore, #tpu.memory_space<semaphore_mem>>
    %13 = tpu.memref_squeeze %12 : memref<1x!tpu.dma_semaphore, #tpu.memory_space<semaphore_mem>> -> memref<!tpu.dma_semaphore, #tpu.memory_space<semaphore_mem>>
    tpu.wait_dma2 semaphore(%13 : memref<!tpu.dma_semaphore, #tpu.memory_space<semaphore_mem>>) src(%arg2 : memref<2x4x16x16xbf16, #tpu.memory_space<any>>) dst(%arg6 : memref<2x4x16x16xbf16, #tpu.memory_space<any>>)
    %c3_i32_3 = arith.constant 3 : i32
    %14 = tpu.memref_slice %arg8[%c3_i32_3] : memref<4x!tpu.dma_semaphore, #tpu.memory_space<semaphore_mem>> -> memref<1x!tpu.dma_semaphore, #tpu.memory_space<semaphore_mem>>
    %15 = tpu.memref_squeeze %14 : memref<1x!tpu.dma_semaphore, #tpu.memory_space<semaphore_mem>> -> memref<!tpu.dma_semaphore, #tpu.memory_space<semaphore_mem>>
    tpu.wait_dma2 semaphore(%15 : memref<!tpu.dma_semaphore, #tpu.memory_space<semaphore_mem>>) src(%arg3 : memref<3x5x7xf32, #tpu.memory_space<any>>) dst(%arg7 : memref<3x5x7xf32, #tpu.memory_space<any>>)
    return
  }
}

</mosaic_0001>

<llo_original>
// kernel: tpu_custom_call.1
$region0: #{tpu_custom_call.1}
  #allocation0 [shape = 'u32[]', space=smem, size = 0x4, offset = 0x4, fixed_abs, tag = 'smem constant byte address 0x4 - core index']
  #allocation1 [shape = 'u32[144,128]{1,0:T(1,128)}', space=vmem, size = 0x12000, scoped, tag = 'internal scratch']
  #allocation2 [shape = 's32[4]{0}', space=sflag, size = 0x10, scoped, tag = 'scratch operand']
  #allocation3 [shape = 's32[]', space=sflag, size = 0x4, offset = 0, fixed_abs, tag = 'sflag constant byte address 0x0 - dummy sync flag']
  #allocation4 [shape = 'u32[0]{0}', space=smem, size = 0, offset = 0, fixed_abs, tag = 'smem constant byte address 0x0 - null']
  #allocation5 [shape = 's32[]', space=sflag, size = 0x4, offset = 0, fixed_abs, tag = 'sflag constant byte address 0x0 - dummy sync flag']
  #allocation6 [shape = 'u32[0]{0}', space=smem, size = 0, offset = 0, fixed_abs, tag = 'smem constant byte address 0x0 - null']
  #allocation7 [shape = 's32[]', space=sflag, size = 0x4, offset = 0, fixed_abs, tag = 'sflag constant byte address 0x0 - dummy sync flag']
  #allocation8 [shape = 'u32[0]{0}', space=smem, size = 0, offset = 0, fixed_abs, tag = 'smem constant byte address 0x0 - null']
  #allocation9 [shape = 's32[]', space=sflag, size = 0x4, offset = 0, fixed_abs, tag = 'sflag constant byte address 0x0 - dummy sync flag']
  %s0 = inlined_call_operand.hbm [shape: f32[2,4,16,16], index: 0, kind: input, shape index: {}]
  %s1 = inlined_call_operand.hbm [shape: f32[2,8,8,8], index: 1, kind: input, shape index: {}]
  %s2 = inlined_call_operand.hbm [shape: bf16[2,4,16,16], index: 2, kind: input, shape index: {}]
  %s3 = inlined_call_operand.vmem [shape: f32[3,5,7], index: 3, kind: input, shape index: {}]
  %s4 = inlined_call_operand.hbm [shape: f32[2,4,16,16], index: 4, kind: output, shape index: {0}]
  %s5 = inlined_call_operand.hbm [shape: f32[2,8,8,8], index: 5, kind: output, shape index: {1}]
  %s6 = inlined_call_operand.hbm [shape: bf16[2,4,16,16], index: 6, kind: output, shape index: {2}]
  %s7 = inlined_call_operand.vmem [shape: f32[3,5,7], index: 7, kind: output, shape index: {3}]
  %8 = xla_tuple %s4, %s5, %s6, %s7
  %s9 = sld [smem:[#allocation0]]
  $region39: #{tpu_custom_call.1} parent=0
    _
  %s11 = ssub.s32 1, %s9
  %s12 = scalar_select 0, %s11, %s9
  %s14 = sshll.u32 1, 14
  %s15 = sxor.u32 4294967295, %s14
  %19 = dma.general %s0, 2048, %s4, [#allocation2], 131072, [#allocation4], 0, 0
  %s20 = scalar_lea.sflag [#allocation2], 1
  %s22 = sshll.u32 1, 14
  %s23 = sxor.u32 4294967295, %s22
  %27 = dma.general %s1, 2048, %s5, %s20, 131072, [#allocation6], 0, 0
  %s28 = scalar_lea.sflag [#allocation2], 2
  %s30 = sshll.u32 1, 14
  %s31 = sxor.u32 4294967295, %s30
  %35 = dma.general %s2, 1024, %s6, %s28, 131072, [#allocation8], 0, 0
  %s36 = scalar_lea.sflag [#allocation2], 3
  %p38 = scmp.lt.u32.totalorder 5, 8
  %p39 = pneg %p38
  // Predicated region
  $region2: #{tpu_custom_call.1} parent=0 // pred_check
    _
  $region3: #{tpu_custom_call.1} parent=0 // pred_check_branch
    %41 = sbr.rel (%p38) target = $region5
  $region4: #{tpu_custom_call.1} parent=0 // pred_region
    %s61 = sand.u32 5, 7
    %p62 = scmp.eq.s32.totalorder %s61, 0
    %p63 = pneg %p62
    // Predicated region
    $region17: #{tpu_custom_call.1} parent=4 // pred_check
      _
    $region18: #{tpu_custom_call.1} parent=4 // pred_check_branch
      %65 = sbr.rel (%p62) target = $region20
    $region19: #{tpu_custom_call.1} parent=4 // pred_region
      %s66 = sand.u32 5, 7
      %s67 = ssub.s32 5, %s66
      %s68 = scalar_lea.vmem %s3, %s67
      %s69 = ssub.s32 5, %s66
      %s70 = scalar_lea.vmem %s7, %s69
      loop: start=0, step=1, limit=1
      $region21: #{tpu_custom_call.1} parent=19 // loop_pre_header
        _
      $region22: #{tpu_custom_call.1} parent=19 // loop_header
        %s72 = sphi 0, %s76
        %p73 = scmp.ge.s32.totalorder %s72, 1
        %s77 = sphi %s3, %s3
        %s78 = sphi %s7, %s7
      $region23: #{tpu_custom_call.1} parent=19 // loop_header_branch
        %75 = sbr.rel (%p73) target = $region27
      $region24: #{tpu_custom_call.1} parent=19 // loop_body
        _
      $region25: #{tpu_custom_call.1} parent=19 // loop_footer
        %s76 = sadd.s32 1, %s72
      $region26: #{tpu_custom_call.1} parent=19 // loop_footer_branch
        %71 = sbr.rel target = $region22
      $region27: #{tpu_custom_call.1} parent=19 // loop_exit
        _
      %s79 = sshll.u32 1, %s66
      %s80 = ssub.s32 %s79, 1
      loop: start=0, step=1, limit=1
      $region28: #{tpu_custom_call.1} parent=19 // loop_pre_header
        _
      $region29: #{tpu_custom_call.1} parent=19 // loop_header
        %s82 = sphi 0, %s86
        %p83 = scmp.ge.s32.totalorder %s82, 1
        %s87 = sphi %s68, %s68
        %s88 = sphi %s70, %s70
      $region30: #{tpu_custom_call.1} parent=19 // loop_header_branch
        %85 = sbr.rel (%p83) target = $region34
      $region31: #{tpu_custom_call.1} parent=19 // loop_body
        %v89 = vld [vmem:[%s87] sm:%s80]
        %90 = vst [vmem:[%s88] sm:%s80] %v89
        %v91 = vld [vmem:[%s87 + $0x8] sm:%s80]
        %92 = vst [vmem:[%s88 + $0x8] sm:%s80] %v91
        %v93 = vld [vmem:[%s87 + $0x10] sm:%s80]
        %94 = vst [vmem:[%s88 + $0x10] sm:%s80] %v93
      $region32: #{tpu_custom_call.1} parent=19 // loop_footer
        %s86 = sadd.s32 1, %s82
      $region33: #{tpu_custom_call.1} parent=19 // loop_footer_branch
        %81 = sbr.rel target = $region29
      $region34: #{tpu_custom_call.1} parent=19 // loop_exit
        _
    $region20: #{tpu_custom_call.1} parent=4 // pred_fallthru
      _
  $region5: #{tpu_custom_call.1} parent=0 // pred_fallthru
    _
  // Predicated region
  $region6: #{tpu_custom_call.1} parent=0 // pred_check
    %p42 = pneg %p38
  $region7: #{tpu_custom_call.1} parent=0 // pred_check_branch
    %44 = sbr.rel (%p42) target = $region9
  $region8: #{tpu_custom_call.1} parent=0 // pred_region
    %s45 = sshll.u32 1, 5
    %s46 = ssub.s32 %s45, 1
    loop: start=0, step=1, limit=1
    $region10: #{tpu_custom_call.1} parent=8 // loop_pre_header
      _
    $region11: #{tpu_custom_call.1} parent=8 // loop_header
      %s48 = sphi 0, %s52
      %p49 = scmp.ge.s32.totalorder %s48, 1
      %s53 = sphi %s3, %s3
      %s54 = sphi %s7, %s7
    $region12: #{tpu_custom_call.1} parent=8 // loop_header_branch
      %51 = sbr.rel (%p49) target = $region16
    $region13: #{tpu_custom_call.1} parent=8 // loop_body
      %v55 = vld [vmem:[%s53] sm:%s46]
      %56 = vst [vmem:[%s54] sm:%s46] %v55
      %v57 = vld [vmem:[%s53 + $0x8] sm:%s46]
      %58 = vst [vmem:[%s54 + $0x8] sm:%s46] %v57
      %v59 = vld [vmem:[%s53 + $0x10] sm:%s46]
      %60 = vst [vmem:[%s54 + $0x10] sm:%s46] %v59
    $region14: #{tpu_custom_call.1} parent=8 // loop_footer
      %s52 = sadd.s32 1, %s48
    $region15: #{tpu_custom_call.1} parent=8 // loop_footer_branch
      %47 = sbr.rel target = $region11
    $region16: #{tpu_custom_call.1} parent=8 // loop_exit
      _
  $region9: #{tpu_custom_call.1} parent=0 // pred_fallthru
    _
  // Predicated region
  $region35: #{tpu_custom_call.1} parent=0 // pred_check
    _
  $region36: #{tpu_custom_call.1} parent=0 // pred_check_branch
    %97 = sbr.rel (0) target = $region38
  $region37: #{tpu_custom_call.1} parent=0 // pred_region
    %98 = vsyncadd %s36, 240
  $region38: #{tpu_custom_call.1} parent=0 // pred_fallthru
    _
  %s99 = smul.u32 2, 4
  %s100 = smul.u32 %s99, 16
  %s101 = smul.u32 %s100, 1
  %s102 = sshll.u32 %s101, 4
  %103 = dma.done [#allocation2], %s102
  %s104 = smul.u32 2, 8
  %s105 = smul.u32 %s104, 8
  %s106 = smul.u32 %s105, 1
  %s107 = sshll.u32 %s106, 4
  %108 = dma.done %s20, %s107
  %s109 = smul.u32 4, 2
  %s110 = smul.u32 %s109, 4
  %s111 = smul.u32 %s110, 2
  %s112 = smul.u32 %s111, 1
  %s113 = sshll.u32 %s112, 4
  %114 = dma.done %s28, %s113
  %s115 = smul.u32 3, 5
  %s116 = smul.u32 %s115, 1
  %s117 = sshll.u32 %s116, 4
  %118 = dma.done %s36, %s117
  %119 = vsyncmov [#allocation2]
  %s120 = vpop.sfrf %119
  %p121 = scmp.eq.s32.totalorder %s120, 0
  %p122 = pneg %p121
  %124 = shalt.err (%p122)
  %s125 = scalar_lea.sflag [#allocation2], 1
  %126 = vsyncmov %s125
  %s127 = vpop.sfrf %126
  %p128 = scmp.eq.s32.totalorder %s127, 0
  %p129 = pneg %p128
  %131 = shalt.err (%p129)
  %s132 = scalar_lea.sflag [#allocation2], 2
  %133 = vsyncmov %s132
  %s134 = vpop.sfrf %133
  %p135 = scmp.eq.s32.totalorder %s134, 0
  %p136 = pneg %p135
  %138 = shalt.err (%p136)
  %s139 = scalar_lea.sflag [#allocation2], 3
  %140 = vsyncmov %s139
  %s141 = vpop.sfrf %140
  %p142 = scmp.eq.s32.totalorder %s141, 0
  %p143 = pneg %p142
  %145 = shalt.err (%p143)

</llo_original>
